<compile_context>
chip_gen: v7x
topology: tpu7x:2x2x1
jax: 0.10.0
libtpu: 0.0.40
codegen_flags: <defaults>
</compile_context>

<pallas_src>
import functools

import jax
import jax.numpy as jnp
from jax.experimental import pallas as pl
from jax.experimental.pallas import tpu as pltpu


def _round_up(v, m):
    return ((v + m - 1) // m) * m


def _pick_row_tile(np_rows):
    # Prefer 512/256 row tiles (256-wide MXU on v6e/v7x); 128 always divides.
    for tm in (512, 256, 128):
        if np_rows % tm == 0:
            return tm
    return np_rows


# ----------------------------- Pallas kernel ------------------------------ #
def fused_encoder_kernel(a_ref, x_ref, w_ref, b_ref, alpha_ref, o_ref,
                         act_ref, cat_ref, *, num_layers, tm, feat):
    """One (layer, row-stripe) step of the fused SAGE(mean)+PReLU stack.

    a_ref:     [TM, Np]  bf16   row-normalized adjacency stripe (streamed)
    x_ref:     [Np, F]   bf16   padded input features (resident, fetched once)
    w_ref:     [1, 2F, F] bf16  this layer's [Wl ; Wr]
    b_ref:     [1, 1, F]  f32   lin_l bias
    alpha_ref: [1, 1, F]  f32   PReLU slope
    o_ref:     [TM, F]    f32   output stripe (valid after the last layer)
    act_ref:   [2, Np, F] bf16  VMEM: double-buffered resident activation
    cat_ref:   [TM, 2F]   bf16  VMEM: merged-matmul operand [agg | x_tile]
    """
    l = pl.program_id(0)                      # layer (sequential)
    i = pl.program_id(1)                      # row stripe
    rs = pl.multiple_of(i * tm, tm)

    ridx = (l + 1) & 1                        # read buffer for this layer
    widx = l & 1                              # write buffer for this layer

    # Stage padded input features into layer-0's read buffer exactly once.
    @pl.when(jnp.logical_and(l == 0, i == 0))
    def _():
        act_ref[1, :, :] = x_ref[...]

    x_cur_ref = act_ref.at[ridx]              # view, no load

    # mean-neighbor aggregation for this row stripe on the MXU (f32 accum)
    agg = jnp.dot(a_ref[...], x_cur_ref[...],
                  preferred_element_type=jnp.float32)

    # merged K=2F contraction operand: [ agg | x_tile ]
    cat_ref[:, :feat] = agg.astype(jnp.bfloat16)
    cat_ref[:, feat:] = x_cur_ref[pl.ds(rs, tm), :]

    # agg @ Wl + x @ Wr + b as one K=2F MXU contraction, f32 accumulation
    h = jnp.dot(cat_ref[...], w_ref[0],
                preferred_element_type=jnp.float32) + b_ref[0]

    # per-channel PReLU in f32
    act = jnp.where(h > 0.0, h, alpha_ref[0] * h)

    # Final layer result goes straight to the output stripe.  (Intermediate
    # layers also write it; those flushes are overwritten by the last layer.)
    o_ref[...] = act

    # Intermediate layers store the bf16 activation for the next layer.
    @pl.when(l < num_layers - 1)
    def _():
        act_ref[widx, pl.ds(rs, tm), :] = act.astype(jnp.bfloat16)


# ------------------------- one-time preprocessing -------------------------- #
def prepare_inputs(x, edge_index, params, hidden_channels):
    """Hoisted per-graph work: dense row-normalized A, padded x, packed params."""
    N, in_channels = x.shape
    num_layers = len(params)
    F = _round_up(max(in_channels, hidden_channels), 128)
    Np = _round_up(N, 128)

    # Dense row-normalized adjacency reproducing PyG scatter-mean (duplicate
    # edges counted, zero rows for isolated nodes); padded rows/cols stay zero.
    src, dst = edge_index[0], edge_index[1]
    A = jnp.zeros((Np, Np), jnp.float32).at[dst, src].add(1.0)
    deg = A.sum(axis=1, keepdims=True)
    A = (A / jnp.maximum(deg, 1.0)).astype(jnp.bfloat16)

    xp = jnp.zeros((Np, F), jnp.float32).at[:N, :in_channels].set(x)
    xp = xp.astype(jnp.bfloat16)

    # pack per-layer params:  W_cat[l] = [ Wl_pad ; Wr_pad ]  -> [2F, F]
    Wc = jnp.zeros((num_layers, 2 * F, F), jnp.float32)
    bc = jnp.zeros((num_layers, 1, F), jnp.float32)
    ac = jnp.zeros((num_layers, 1, F), jnp.float32)
    for li, (Wl, Wr, b, alpha) in enumerate(params):
        fin, fout = Wl.shape
        Wc = Wc.at[li, :fin, :fout].set(Wl)
        Wc = Wc.at[li, F:F + fin, :fout].set(Wr)
        bc = bc.at[li, 0, :fout].set(b.reshape(-1))
        ac = ac.at[li, 0, :fout].set(alpha.reshape(-1))
    Wc = Wc.astype(jnp.bfloat16)
    return A, xp, Wc, bc, ac


# ------------------------------ hot path ----------------------------------- #
@functools.partial(jax.jit, static_argnames=("batch_size", "hidden_channels"))
def encoder_forward(A, xp, Wc, bc, ac, *, batch_size, hidden_channels):
    Np = A.shape[0]
    F = xp.shape[1]
    num_layers = Wc.shape[0]
    TM = _pick_row_tile(Np)
    num_tiles = Np // TM

    # Rough VMEM demand (double-buffered A stripes / x / weights / out tiles,
    # resident activation double-buffer, cat scratch) with 2x headroom.
    vmem_bytes = (2 * TM * Np * 2          # A stripe buffers (bf16)
                  + 2 * Np * F * 2         # resident x input (bf16)
                  + 2 * Np * F * 2         # activation scratch (bf16, 2 bufs)
                  + TM * 2 * F * 2         # cat scratch
                  + 2 * 2 * F * F * 2      # weight buffers
                  + 2 * TM * F * 4         # output buffers (f32)
                  + (1 << 20))
    vmem_limit = int(min(max(2 * vmem_bytes, 32 << 20), 112 << 20))

    flops = num_layers * (2 * Np * Np * F + 2 * Np * (2 * F) * F)
    bytes_accessed = (num_layers * Np * Np * 2 + Np * F * 2
                      + num_layers * 2 * F * F * 2 + Np * F * 4)

    kernel = functools.partial(fused_encoder_kernel,
                               num_layers=num_layers, tm=TM, feat=F)

    out = pl.pallas_call(
        kernel,
        out_shape=jax.ShapeDtypeStruct((Np, F), jnp.float32),
        grid_spec=pltpu.PrefetchScalarGridSpec(
            num_scalar_prefetch=0,
            grid=(num_layers, num_tiles),
            in_specs=[
                pl.BlockSpec((TM, Np), lambda l, i: (i, 0)),           # A stripe
                pl.BlockSpec((Np, F), lambda l, i: (0, 0)),            # x (resident)
                pl.BlockSpec((1, 2 * F, F), lambda l, i: (l, 0, 0)),   # W[l]
                pl.BlockSpec((1, 1, F), lambda l, i: (l, 0, 0)),       # b[l]
                pl.BlockSpec((1, 1, F), lambda l, i: (l, 0, 0)),       # alpha[l]
            ],
            out_specs=pl.BlockSpec((TM, F), lambda l, i: (i, 0)),
            scratch_shapes=[
                pltpu.VMEM((2, Np, F), jnp.bfloat16),   # resident activations
                pltpu.VMEM((TM, 2 * F), jnp.bfloat16),  # [agg | x] operand
            ],
        ),
        compiler_params=pltpu.CompilerParams(
            # Layer axis is sequential; the row axis must also stay "arbitrary"
            # because the VMEM-resident activation carries a cross-stripe
            # dependence between layers (see v7x TODO at top of file).
            dimension_semantics=("arbitrary", "arbitrary"),
            vmem_limit_bytes=vmem_limit,
        ),
        cost_estimate=pl.CostEstimate(flops=flops, transcendentals=0,
                                      bytes_accessed=bytes_accessed),
    )(A, xp, Wc, bc, ac)

    return out[:batch_size, :hidden_channels]


# ------------------------------- params ------------------------------------ #
def init_params(key, in_channels, hidden_channels):
    dims = [(in_channels, hidden_channels),
            (hidden_channels, hidden_channels),
            (hidden_channels, hidden_channels)]
    params = []
    for fin, fout in dims:
        key, k1, k2, k3 = jax.random.split(key, 4)
        scale = 1.0 / jnp.sqrt(jnp.float32(fin))
        Wl = jax.random.uniform(k1, (fin, fout), jnp.float32, -scale, scale)
        Wr = jax.random.uniform(k2, (fin, fout), jnp.float32, -scale, scale)
        b = jax.random.uniform(k3, (1, fout), jnp.float32, -scale, scale)
        alpha = jnp.full((1, fout), 0.25, jnp.float32)  # PyTorch PReLU default
        params.append((Wl, Wr, b, alpha))
    return params


# pure-JAX f32 reference for a sanity check
def encoder_reference(x, edge_index, batch_size, params):
    N = x.shape[0]
    src, dst = edge_index[0], edge_index[1]
    A = jnp.zeros((N, N), jnp.float32).at[dst, src].add(1.0)
    deg = A.sum(axis=1, keepdims=True)
    A = A / jnp.maximum(deg, 1.0)
    h = x
    for (Wl, Wr, b, alpha) in params:
        z = (A @ h) @ Wl + h @ Wr + b
        h = jnp.where(z > 0, z, alpha * z)
    return h[:batch_size]


if __name__ == "__main__":
    key = jax.random.PRNGKey(0)
    N, E = 16, 48
    in_channels, hidden_channels = 16, 32
    batch_size = 8

    key, kx, ke, kp = jax.random.split(key, 4)
    x = jax.random.normal(kx, (N, in_channels), jnp.float32)
    edge_index = jax.random.randint(ke, (2, E), 0, N, jnp.int32)
    params = init_params(kp, in_channels, hidden_channels)

    # one-time per-graph preprocessing (hoisted out of the hot path)
    A, xp, Wc, bc, ac = prepare_inputs(x, edge_index, params, hidden_channels)

    out = encoder_forward(A, xp, Wc, bc, ac,
                          batch_size=batch_size,
                          hidden_channels=hidden_channels)
    out = jax.block_until_ready(out)

    ref = encoder_reference(x, edge_index, batch_size, params)
    assert out.shape == (batch_size, hidden_channels)
    # kernel runs A / activations / weights in bf16 (f32 accumulation)
    assert jnp.allclose(out, ref, atol=7e-2, rtol=7e-2), \
        float(jnp.max(jnp.abs(out - ref)))

    print("KERNEL_OK")
</pallas_src>

<mosaic_0001>
module attributes {stable_mosaic.version = 11 : i64} {
  func.func @fused_encoder_kernel(%arg0: i32, %arg1: i32, %arg2: memref<128x128xbf16, #tpu.memory_space<vmem>>, %arg3: memref<128x128xbf16, #tpu.memory_space<vmem>>, %arg4: memref<1x256x128xbf16, #tpu.memory_space<vmem>>, %arg5: memref<1x1x128xf32, #tpu.memory_space<vmem>>, %arg6: memref<1x1x128xf32, #tpu.memory_space<vmem>>, %arg7: memref<128x128xf32, #tpu.memory_space<vmem>>, %arg8: memref<2x128x128xbf16, #tpu.memory_space<vmem>>, %arg9: memref<128x256xbf16, #tpu.memory_space<vmem>>) attributes {dimension_semantics = [#tpu.dimension_semantics<arbitrary>, #tpu.dimension_semantics<arbitrary>], iteration_bounds = array<i64: 3, 1>, scalar_prefetch = 0 : i64, scratch_operands = 2 : i64, tpu.core_type = #tpu.core_type<tc>, window_params = [{transform_indices = @transform_0, window_bounds = array<i64: 128, 128>}, {pipeline_mode = #tpu.pipeline_mode<synchronous>, transform_indices = @transform_1, window_bounds = array<i64: 128, 128>}, {transform_indices = @transform_2, window_bounds = array<i64: 1, 256, 128>}, {transform_indices = @transform_3, window_bounds = array<i64: 1, 1, 128>}, {transform_indices = @transform_4, window_bounds = array<i64: 1, 1, 128>}, {transform_indices = @transform_5, window_bounds = array<i64: 128, 128>}]} {
    %c128_i32 = arith.constant 128 : i32
    %0 = arith.muli %arg1, %c128_i32 : i32
    %1 = tpu.assume_multiple %0, 128 : i32
    %c1_i32 = arith.constant 1 : i32
    %2 = arith.addi %arg0, %c1_i32 : i32
    %c1_i32_0 = arith.constant 1 : i32
    %3 = arith.andi %2, %c1_i32_0 : i32
    %c1_i32_1 = arith.constant 1 : i32
    %4 = arith.andi %arg0, %c1_i32_1 : i32
    %c0_i32 = arith.constant 0 : i32
    %5 = arith.cmpi eq, %arg0, %c0_i32 : i32
    %c0_i32_2 = arith.constant 0 : i32
    %6 = arith.cmpi eq, %arg1, %c0_i32_2 : i32
    %7 = arith.andi %5, %6 : i1
    %8 = arith.extui %7 : i1 to i32
    %c0_i32_3 = arith.constant 0 : i32
    %9 = arith.cmpi ne, %8, %c0_i32_3 : i32
    scf.if %9 {
      %c0_29 = arith.constant 0 : index
      %c0_30 = arith.constant 0 : index
      %41 = vector.load %arg3[%c0_29, %c0_30] : memref<128x128xbf16, #tpu.memory_space<vmem>>, vector<128x128xbf16>
      %c1 = arith.constant 1 : index
      %c0_31 = arith.constant 0 : index
      %c0_32 = arith.constant 0 : index
      %42 = vector.load %arg8[%c1, %c0_31, %c0_32] : memref<2x128x128xbf16, #tpu.memory_space<vmem>>, vector<1x128x128xbf16>
      %43 = vector.shape_cast %42 : vector<1x128x128xbf16> to vector<128x128xbf16>
      %44 = vector.shape_cast %41 : vector<128x128xbf16> to vector<1x128x128xbf16>
      tpu.vector_store %arg8[%c1, %c0_31, %c0_32], %44 {strides = array<i32>} : memref<2x128x128xbf16, #tpu.memory_space<vmem>>, vector<1x128x128xbf16>,
    } else {
    }
    %c0 = arith.constant 0 : index
    %c0_4 = arith.constant 0 : index
    %10 = vector.load %arg2[%c0, %c0_4] : memref<128x128xbf16, #tpu.memory_space<vmem>>, vector<128x128xbf16>
    %11 = arith.index_cast %3 : i32 to index
    %c0_5 = arith.constant 0 : index
    %c0_6 = arith.constant 0 : index
    %12 = vector.load %arg8[%11, %c0_5, %c0_6] : memref<2x128x128xbf16, #tpu.memory_space<vmem>>, vector<1x128x128xbf16>
    %13 = vector.shape_cast %12 : vector<1x128x128xbf16> to vector<128x128xbf16>
    %cst = arith.constant dense<0.000000e+00> : vector<128x128xf32>
    %14 = tpu.matmul %10, %13, %cst {dimension_numbers = #tpu.dot_dimension_numbers<[1], [0], [0], [1], [0, 0, 1, 1], [], []>} : vector<128x128xbf16>, vector<128x128xbf16>, vector<128x128xf32> -> vector<128x128xf32>
    %15 = arith.truncf %14 : vector<128x128xf32> to vector<128x128xbf16>
    %c0_7 = arith.constant 0 : index
    %c0_8 = arith.constant 0 : index
    %16 = vector.load %arg9[%c0_7, %c0_8] : memref<128x256xbf16, #tpu.memory_space<vmem>>, vector<128x128xbf16>
    tpu.vector_store %arg9[%c0_7, %c0_8], %15 {strides = array<i32>} : memref<128x256xbf16, #tpu.memory_space<vmem>>, vector<128x128xbf16>,
    %c0_i32_9 = arith.constant 0 : i32
    %c0_i32_10 = arith.constant 0 : i32
    %17 = tpu.memref_slice %arg8[%3, %c0_i32_9, %c0_i32_10] : memref<2x128x128xbf16, #tpu.memory_space<vmem>> -> memref<1x128x128xbf16, #tpu.memory_space<vmem>>
    %18 = tpu.memref_squeeze %17 : memref<1x128x128xbf16, #tpu.memory_space<vmem>> -> memref<128x128xbf16, #tpu.memory_space<vmem>>
    %19 = arith.index_cast %1 : i32 to index
    %c0_11 = arith.constant 0 : index
    %20 = vector.load %18[%19, %c0_11] : memref<128x128xbf16, #tpu.memory_space<vmem>>, vector<128x128xbf16>
    %c0_12 = arith.constant 0 : index
    %c128 = arith.constant 128 : index
    %21 = vector.load %arg9[%c0_12, %c128] : memref<128x256xbf16, #tpu.memory_space<vmem>>, vector<128x128xbf16>
    tpu.vector_store %arg9[%c0_12, %c128], %20 {strides = array<i32>} : memref<128x256xbf16, #tpu.memory_space<vmem>>, vector<128x128xbf16>,
    %c0_13 = arith.constant 0 : index
    %c0_14 = arith.constant 0 : index
    %22 = vector.load %arg9[%c0_13, %c0_14] : memref<128x256xbf16, #tpu.memory_space<vmem>>, vector<128x256xbf16>
    %c0_15 = arith.constant 0 : index
    %c0_16 = arith.constant 0 : index
    %c0_17 = arith.constant 0 : index
    %23 = vector.load %arg4[%c0_15, %c0_16, %c0_17] : memref<1x256x128xbf16, #tpu.memory_space<vmem>>, vector<1x256x128xbf16>
    %24 = vector.shape_cast %23 : vector<1x256x128xbf16> to vector<256x128xbf16>
    %cst_18 = arith.constant dense<0.000000e+00> : vector<128x128xf32>
    %25 = tpu.matmul %22, %24, %cst_18 {dimension_numbers = #tpu.dot_dimension_numbers<[1], [0], [0], [1], [0, 0, 1, 1], [], []>} : vector<128x256xbf16>, vector<256x128xbf16>, vector<128x128xf32> -> vector<128x128xf32>
    %c0_19 = arith.constant 0 : index
    %c0_20 = arith.constant 0 : index
    %c0_21 = arith.constant 0 : index
    %26 = vector.load %arg5[%c0_19, %c0_20, %c0_21] : memref<1x1x128xf32, #tpu.memory_space<vmem>>, vector<1x1x128xf32>
    %27 = vector.shape_cast %26 : vector<1x1x128xf32> to vector<1x128xf32>
    %28 = vector.broadcast %27 : vector<1x128xf32> to vector<128x128xf32>
    %29 = arith.addf %25, %28 : vector<128x128xf32>
    %cst_22 = arith.constant 0.000000e+00 : f32
    %30 = vector.broadcast %cst_22 : f32 to vector<128x128xf32>
    %31 = arith.cmpf ogt, %29, %30 : vector<128x128xf32>
    %c0_23 = arith.constant 0 : index
    %c0_24 = arith.constant 0 : index
    %c0_25 = arith.constant 0 : index
    %32 = vector.load %arg6[%c0_23, %c0_24, %c0_25] : memref<1x1x128xf32, #tpu.memory_space<vmem>>, vector<1x1x128xf32>
    %33 = vector.shape_cast %32 : vector<1x1x128xf32> to vector<1x128xf32>
    %34 = vector.broadcast %33 : vector<1x128xf32> to vector<128x128xf32>
    %35 = arith.mulf %34, %29 : vector<128x128xf32>
    %36 = arith.select %31, %29, %35 : vector<128x128xi1>, vector<128x128xf32>
    %c0_26 = arith.constant 0 : index
    %c0_27 = arith.constant 0 : index
    %37 = vector.load %arg7[%c0_26, %c0_27] : memref<128x128xf32, #tpu.memory_space<vmem>>, vector<128x128xf32>
    tpu.vector_store %arg7[%c0_26, %c0_27], %36 {strides = array<i32>} : memref<128x128xf32, #tpu.memory_space<vmem>>, vector<128x128xf32>,
    %c2_i32 = arith.constant 2 : i32
    %38 = arith.cmpi slt, %arg0, %c2_i32 : i32
    %39 = arith.extui %38 : i1 to i32
    %c0_i32_28 = arith.constant 0 : i32
    %40 = arith.cmpi ne, %39, %c0_i32_28 : i32
    scf.if %40 {
      %41 = arith.truncf %36 : vector<128x128xf32> to vector<128x128xbf16>
      %42 = arith.index_cast %4 : i32 to index
      %43 = arith.index_cast %1 : i32 to index
      %c0_29 = arith.constant 0 : index
      %44 = vector.load %arg8[%42, %43, %c0_29] : memref<2x128x128xbf16, #tpu.memory_space<vmem>>, vector<1x128x128xbf16>
      %45 = vector.shape_cast %44 : vector<1x128x128xbf16> to vector<128x128xbf16>
      %46 = vector.shape_cast %41 : vector<128x128xbf16> to vector<1x128x128xbf16>
      tpu.vector_store %arg8[%42, %43, %c0_29], %46 {strides = array<i32>} : memref<2x128x128xbf16, #tpu.memory_space<vmem>>, vector<1x128x128xbf16>,
    } else {
    }
    return
  }
  func.func @transform_0(%arg0: i32, %arg1: i32) -> (i32, i32) {
    %c0_i32 = arith.constant 0 : i32
    %c0_i32_0 = arith.constant 0 : i32
    return %arg1, %c0_i32 : i32, i32
  }
  func.func @transform_1(%arg0: i32, %arg1: i32) -> (i32, i32) {
    %c0_i32 = arith.constant 0 : i32
    %c0_i32_0 = arith.constant 0 : i32
    %c0_i32_1 = arith.constant 0 : i32
    return %c0_i32, %c0_i32_0 : i32, i32
  }
  func.func @transform_2(%arg0: i32, %arg1: i32) -> (i32, i32, i32) {
    %c0_i32 = arith.constant 0 : i32
    %c0_i32_0 = arith.constant 0 : i32
    %c0_i32_1 = arith.constant 0 : i32
    return %arg0, %c0_i32, %c0_i32_0 : i32, i32, i32
  }
  func.func @transform_3(%arg0: i32, %arg1: i32) -> (i32, i32, i32) {
    %c0_i32 = arith.constant 0 : i32
    %c0_i32_0 = arith.constant 0 : i32
    %c0_i32_1 = arith.constant 0 : i32
    return %arg0, %c0_i32, %c0_i32_0 : i32, i32, i32
  }
  func.func @transform_4(%arg0: i32, %arg1: i32) -> (i32, i32, i32) {
    %c0_i32 = arith.constant 0 : i32
    %c0_i32_0 = arith.constant 0 : i32
    %c0_i32_1 = arith.constant 0 : i32
    return %arg0, %c0_i32, %c0_i32_0 : i32, i32, i32
  }
  func.func @transform_5(%arg0: i32, %arg1: i32) -> (i32, i32) {
    %c0_i32 = arith.constant 0 : i32
    %c0_i32_0 = arith.constant 0 : i32
    return %arg1, %c0_i32 : i32, i32
  }
}

</mosaic_0001>

<llo_original>
// kernel: encoder_forward.1
$region0: #{encoder_forward.1}
  #allocation0 [shape = 'u32[]', space=smem, size = 0x4, offset = 0x4, fixed_abs, tag = 'smem constant byte address 0x4 - core index']
  #allocation1 [shape = 'u32[144,128]{1,0:T(1,128)}', space=vmem, size = 0x12000, scoped, tag = 'internal scratch']
  #allocation2 [shape = 'bf16[2,128,128]{2,1,0:T(16,128)(2,1)}', space=vmem, size = 0x10000, scoped, tag = 'scratch operand']
  #allocation3 [shape = 'bf16[128,256]{1,0:T(16,128)(2,1)}', space=vmem, size = 0x10000, scoped, tag = 'scratch operand']
  %s0 = inlined_call_operand.hbm [shape: bf16[128,128], index: 0, kind: input, shape index: {}]
  %s1 = inlined_call_operand.hbm [shape: bf16[128,128], index: 1, kind: input, shape index: {}]
  %s2 = inlined_call_operand.hbm [shape: bf16[3,256,128], index: 2, kind: input, shape index: {}]
  %s3 = inlined_call_operand.vmem [shape: f32[3,1,128], index: 3, kind: input, shape index: {}]
  %s4 = inlined_call_operand.vmem [shape: f32[3,1,128], index: 4, kind: input, shape index: {}]
  %s5 = inlined_call_operand.vmem [shape: f32[128,128], index: 5, kind: output, shape index: {}]
  %s6 = sld [smem:[#allocation0]]
  $region73: #{encoder_forward.1} parent=0
    _
  %s8 = ssub.s32 1, %s6
  %s9 = scalar_select 0, %s8, %s6
  $region1: #{encoder_forward.1} parent=0
    #allocation4 [shape = 'u8[32768]{0}', space=vmem, size = 0x8000, scoped, tag = 'input window, operand 0, single buffered']
    #allocation5 [shape = 's32[2]{0}', space=sflag, size = 0x8, scoped, tag = 'scoped memory for encoder_forward.1']
    #allocation6 [shape = 'u8[32768]{0}', space=vmem, size = 0x8000, scoped, tag = 'input window, operand 1, single buffered']
    #allocation7 [shape = 's32[1]{0}', space=sflag, size = 0x4, scoped, tag = 'scoped memory for encoder_forward.1']
    #allocation8 [shape = 'u8[131072]{0}', space=vmem, size = 0x20000, scoped, tag = 'input window, operand 2']
    %10 = vsyncpa [#allocation5], 0
    %11 = vsyncpa [#allocation7], 0
    loop: start=0, step=1, limit=5
    $region2: #{encoder_forward.1} parent=1 // loop_pre_header
      _
    $region3: #{encoder_forward.1} parent=1 // loop_header
      %s13 = sphi 0, %s17
      %p14 = scmp.ge.s32.totalorder %s13, 5
      %s20 = sphi 0, %s32
      %s21 = sphi 0, %s28
      %s22 = sphi 0, %s20
      %s23 = sphi 0, %s21
      %s24 = sphi 0, %s22
      %s25 = sphi 0, %s23
      %s35 = sphi 0, %s37
      %s38 = sphi 0, %s35
      %s39 = sphi 0, %s38
      %s55 = sphi 0, %s39
      %s59 = sphi 0, %s59
      %s61 = sphi 0, %s59
      %s62 = sphi 0, %s61
      %s76 = sphi 0, %s62
      %s82 = sphi 0, %s84
      %s85 = sphi 0, %s82
      %s86 = sphi 0, %s85
      %s102 = sphi 0, %s86
      %s108 = sphi 0, %s110
      %s111 = sphi 0, %s108
      %s112 = sphi 0, %s111
      %s128 = sphi 0, %s112
      %s134 = sphi 0, %s136
      %s137 = sphi 0, %s134
      %s138 = sphi 0, %s137
      %s154 = sphi 0, %s138
      %s160 = sphi 0, %s162
      %s163 = sphi 0, %s160
      %s164 = sphi 0, %s163
      %s180 = sphi 0, %s164
    $region4: #{encoder_forward.1} parent=1 // loop_header_branch
      %16 = sbr.rel (%p14) target = $region8
    $region5: #{encoder_forward.1} parent=1 // loop_body
      %s18 = ssub.s32 %s13, 1
      %s19 = ssub.s32 %s13, 2
      %s26 = sadd.s32 1, %s21
      %p27 = scmp.ge.s32.totalorder %s26, 1
      %s28 = scalar_select %p27, 0, %s26
      %s29 = sadd.s32 1, %s20
      %s30 = scalar_select %p27, %s29, %s20
      %p31 = scmp.ge.s32.totalorder %s30, 3
      %s32 = scalar_select %p31, 0, %s30
      %s33 = ssub.s32 %s21, %s28
      %p34 = scmp.eq.s32.totalorder %s33, 0
      %s36 = sadd.s32 %s35, 1
      %s37 = scalar_select %p34, %s35, %s36
      %p40 = pneg %p34
      %p41 = scmp.eq.s32.totalorder %s13, 2
      %p42 = por %p40, %p41
      %p43 = scmp.ne.s32.totalorder %s35, %s38
      %p44 = scmp.eq.s32.totalorder %s13, 0
      %p45 = por %p43, %p44
      %p46 = scmp.ne.s32.totalorder %s35, %s38
      %p47 = scmp.eq.s32.totalorder %s18, 2
      %p48 = por %p46, %p47
      %p49 = scmp.ne.s32.totalorder %s38, %s39
      %p50 = scmp.eq.s32.totalorder %s18, 0
      %p51 = por %p49, %p50
      %p52 = scmp.ne.s32.totalorder %s38, %s39
      %p53 = scmp.eq.s32.totalorder %s19, 2
      %p54 = por %p52, %p53
      %p56 = scmp.ne.s32.totalorder %s39, %s55
      %p57 = scmp.eq.s32.totalorder %s19, 0
      %p58 = por %p56, %p57
      %s60 = sadd.s32 %s59, 1
      %p63 = scmp.eq.s32.totalorder %s13, 2
      %p64 = scmp.ne.s32.totalorder %s59, %s61
      %p65 = scmp.eq.s32.totalorder %s13, 0
      %p66 = por %p64, %p65
      %p67 = scmp.ne.s32.totalorder %s59, %s61
      %p68 = scmp.eq.s32.totalorder %s18, 2
      %p69 = por %p67, %p68
      %p70 = scmp.ne.s32.totalorder %s61, %s62
      %p71 = scmp.eq.s32.totalorder %s18, 0
      %p72 = por %p70, %p71
      %p73 = scmp.ne.s32.totalorder %s61, %s62
      %p74 = scmp.eq.s32.totalorder %s19, 2
      %p75 = por %p73, %p74
      %p77 = scmp.ne.s32.totalorder %s62, %s76
      %p78 = scmp.eq.s32.totalorder %s19, 0
      %p79 = por %p77, %p78
      %s80 = ssub.s32 %s20, %s32
      %p81 = scmp.eq.s32.totalorder %s80, 0
      %s83 = sadd.s32 %s82, 1
      %s84 = scalar_select %p81, %s82, %s83
      %p87 = pneg %p81
      %p88 = scmp.eq.s32.totalorder %s13, 2
      %p89 = por %p87, %p88
      %p90 = scmp.ne.s32.totalorder %s82, %s85
      %p91 = scmp.eq.s32.totalorder %s13, 0
      %p92 = por %p90, %p91
      %p93 = scmp.ne.s32.totalorder %s82, %s85
      %p94 = scmp.eq.s32.totalorder %s18, 2
      %p95 = por %p93, %p94
      %p96 = scmp.ne.s32.totalorder %s85, %s86
      %p97 = scmp.eq.s32.totalorder %s18, 0
      %p98 = por %p96, %p97
      %p99 = scmp.ne.s32.totalorder %s85, %s86
      %p100 = scmp.eq.s32.totalorder %s19, 2
      %p101 = por %p99, %p100
      %p103 = scmp.ne.s32.totalorder %s86, %s102
      %p104 = scmp.eq.s32.totalorder %s19, 0
      %p105 = por %p103, %p104
      %s106 = ssub.s32 %s20, %s32
      %p107 = scmp.eq.s32.totalorder %s106, 0
      %s109 = sadd.s32 %s108, 1
      %s110 = scalar_select %p107, %s108, %s109
      %p113 = pneg %p107
      %p114 = scmp.eq.s32.totalorder %s13, 2
      %p115 = por %p113, %p114
      %p116 = scmp.ne.s32.totalorder %s108, %s111
      %p117 = scmp.eq.s32.totalorder %s13, 0
      %p118 = por %p116, %p117
      %p119 = scmp.ne.s32.totalorder %s108, %s111
      %p120 = scmp.eq.s32.totalorder %s18, 2
      %p121 = por %p119, %p120
      %p122 = scmp.ne.s32.totalorder %s111, %s112
      %p123 = scmp.eq.s32.totalorder %s18, 0
      %p124 = por %p122, %p123
      %p125 = scmp.ne.s32.totalorder %s111, %s112
      %p126 = scmp.eq.s32.totalorder %s19, 2
      %p127 = por %p125, %p126
      %p129 = scmp.ne.s32.totalorder %s112, %s128
      %p130 = scmp.eq.s32.totalorder %s19, 0
      %p131 = por %p129, %p130
      %s132 = ssub.s32 %s20, %s32
      %p133 = scmp.eq.s32.totalorder %s132, 0
      %s135 = sadd.s32 %s134, 1
      %s136 = scalar_select %p133, %s134, %s135
      %p139 = pneg %p133
      %p140 = scmp.eq.s32.totalorder %s13, 2
      %p141 = por %p139, %p140
      %p142 = scmp.ne.s32.totalorder %s134, %s137
      %p143 = scmp.eq.s32.totalorder %s13, 0
      %p144 = por %p142, %p143
      %p145 = scmp.ne.s32.totalorder %s134, %s137
      %p146 = scmp.eq.s32.totalorder %s18, 2
      %p147 = por %p145, %p146
      %p148 = scmp.ne.s32.totalorder %s137, %s138
      %p149 = scmp.eq.s32.totalorder %s18, 0
      %p150 = por %p148, %p149
      %p151 = scmp.ne.s32.totalorder %s137, %s138
      %p152 = scmp.eq.s32.totalorder %s19, 2
      %p153 = por %p151, %p152
      %p155 = scmp.ne.s32.totalorder %s138, %s154
      %p156 = scmp.eq.s32.totalorder %s19, 0
      %p157 = por %p155, %p156
      %s158 = ssub.s32 %s21, %s28
      %p159 = scmp.eq.s32.totalorder %s158, 0
      %s161 = sadd.s32 %s160, 1
      %s162 = scalar_select %p159, %s160, %s161
      %p165 = pneg %p159
      %p166 = scmp.eq.s32.totalorder %s13, 2
      %p167 = por %p165, %p166
      %p168 = scmp.ne.s32.totalorder %s160, %s163
      %p169 = scmp.eq.s32.totalorder %s13, 0
      %p170 = por %p168, %p169
      %p171 = scmp.ne.s32.totalorder %s160, %s163
      %p172 = scmp.eq.s32.totalorder %s18, 2
      %p173 = por %p171, %p172
      %p174 = scmp.ne.s32.totalorder %s163, %s164
      %p175 = scmp.eq.s32.totalorder %s18, 0
      %p176 = por %p174, %p175
      %p177 = scmp.ne.s32.totalorder %s163, %s164
      %p178 = scmp.eq.s32.totalorder %s19, 2
      %p179 = por %p177, %p178
      %p181 = scmp.ne.s32.totalorder %s164, %s180
      %p182 = scmp.eq.s32.totalorder %s19, 0
      %p183 = por %p181, %p182
      %p184 = scmp.le.s32.totalorder 1, %s13
      %p185 = scmp.lt.s32.totalorder %s13, 4
      %p186 = pnand %p184, %p185
      %p187 = pneg %p186
      // Predicated region
      $region9: #{encoder_forward.1} parent=5 // pred_check
        _
      $region10: #{encoder_forward.1} parent=5 // pred_check_branch
        %189 = sbr.rel (%p186) target = $region12
      $region11: #{encoder_forward.1} parent=5 // pred_region
        %s190 = ssub.s32 %s13, 1
        // Predicated region
        $region13: #{encoder_forward.1} parent=11 // pred_check
          %p191 = pneg %p51
        $region14: #{encoder_forward.1} parent=11 // pred_check_branch
          %193 = sbr.rel (%p191) target = $region16
        $region15: #{encoder_forward.1} parent=11 // pred_region
          %s194 = smul.u32 16, %s23
          %s196 = ssub.s32 1024, 1024
          %197 = vsyncadd [#allocation5], %s196
          %s198 = smul.addr %s194, 64
          %s199 = scalar_lea.hbm %s0, %s198
          %s200 = sshll.u32 [#allocation4], 4
          %s201 = int_to_ptr.vmem [resolvable:$true] %s200
          %206 = dma.hbm_to_vmem [thread:$0]  %s199, 1024, %s201, [#allocation5], 64, 64, 4
        $region16: #{encoder_forward.1} parent=11 // pred_fallthru
          _
        // Predicated region
        $region17: #{encoder_forward.1} parent=11 // pred_check
          %p207 = pneg %p72
        $region18: #{encoder_forward.1} parent=11 // pred_check_branch
          %209 = sbr.rel (%p207) target = $region20
        $region19: #{encoder_forward.1} parent=11 // pred_region
          %s211 = ssub.s32 1024, 1024
          %212 = vsyncadd [#allocation7], %s211
          %s213 = sshll.u32 [#allocation6], 4
          %s214 = int_to_ptr.vmem [resolvable:$true] %s213
          %219 = dma.hbm_to_vmem [thread:$0]  %s1, 1024, %s214, [#allocation7], 64, 64, 4
        $region20: #{encoder_forward.1} parent=11 // pred_fallthru
          _
      $region12: #{encoder_forward.1} parent=5 // pred_fallthru
        _
      %p220 = scmp.lt.s32.totalorder %s13, 3
      // Predicated region
      $region21: #{encoder_forward.1} parent=5 // pred_check
        %p221 = pneg %p220
      $region22: #{encoder_forward.1} parent=5 // pred_check_branch
        %223 = sbr.rel (%p221) target = $region24
      $region23: #{encoder_forward.1} parent=5 // pred_region
        // Predicated region
        $region25: #{encoder_forward.1} parent=23 // pred_check
          %p224 = pneg %p92
        $region26: #{encoder_forward.1} parent=23 // pred_check_branch
          %226 = sbr.rel (%p224) target = $region28
        $region27: #{encoder_forward.1} parent=23 // pred_region
          %s227 = sand.u32 %s13, 1
          %s228 = scalar_lea.sflag [#allocation5], %s227
          %s229 = sand.u32 %s82, 1
          %s230 = smul.addr %s229, 128
          %s231 = scalar_lea.vmem [#allocation8], %s230
          %s233 = ssub.s32 2048, 2048
          %234 = vsyncadd %s228, %s233
          %s235 = smul.addr %s20, 32
          %s236 = smul.addr %s235, 64
          %s237 = scalar_lea.hbm %s2, %s236
          %s238 = sshll.u32 %s231, 4
          %s239 = int_to_ptr.vmem [resolvable:$true] %s238
          %244 = dma.hbm_to_vmem [thread:$0]  %s237, 2048, %s239, %s228, 64, 64, 4
        $region28: #{encoder_forward.1} parent=23 // pred_fallthru
          _
        // Predicated region
        $region29: #{encoder_forward.1} parent=23 // pred_check
          %p245 = pneg %p118
        $region30: #{encoder_forward.1} parent=23 // pred_check_branch
          %247 = sbr.rel (%p245) target = $region32
        $region31: #{encoder_forward.1} parent=23 // pred_region
          %p248 = scmp.lt.s32.totalorder %s20, 2
          %s249 = scalar_select %p248, %s20, 2
          %s250 = scalar_lea.vmem %s3, %s249
        $region32: #{encoder_forward.1} parent=23 // pred_fallthru
          _
        // Predicated region
        $region33: #{encoder_forward.1} parent=23 // pred_check
          %p251 = pneg %p144
        $region34: #{encoder_forward.1} parent=23 // pred_check_branch
          %253 = sbr.rel (%p251) target = $region36
        $region35: #{encoder_forward.1} parent=23 // pred_region
          %p254 = scmp.lt.s32.totalorder %s20, 2
          %s255 = scalar_select %p254, %s20, 2
          %s256 = scalar_lea.vmem %s4, %s255
        $region36: #{encoder_forward.1} parent=23 // pred_fallthru
          _
      $region24: #{encoder_forward.1} parent=5 // pred_fallthru
        _
      %p257 = scmp.le.s32.totalorder 1, %s13
      %p258 = scmp.lt.s32.totalorder %s13, 4
      %p259 = pnand %p257, %p258
      %p260 = pneg %p259
      // Predicated region
      $region37: #{encoder_forward.1} parent=5 // pred_check
        _
      $region38: #{encoder_forward.1} parent=5 // pred_check_branch
        %262 = sbr.rel (%p259) target = $region40
      $region39: #{encoder_forward.1} parent=5 // pred_region
        %s263 = ssub.s32 %s13, 1
        // Predicated region
        $region41: #{encoder_forward.1} parent=39 // pred_check
          %p264 = pneg %p51
        $region42: #{encoder_forward.1} parent=39 // pred_check_branch
          %266 = sbr.rel (%p264) target = $region44
        $region43: #{encoder_forward.1} parent=39 // pred_region
          %267 = dma.done [#allocation5], 1024
        $region44: #{encoder_forward.1} parent=39 // pred_fallthru
          _
        // Predicated region
        $region45: #{encoder_forward.1} parent=39 // pred_check
          %p268 = pneg %p72
        $region46: #{encoder_forward.1} parent=39 // pred_check_branch
          %270 = sbr.rel (%p268) target = $region48
        $region47: #{encoder_forward.1} parent=39 // pred_region
          %271 = dma.done [#allocation7], 1024
        $region48: #{encoder_forward.1} parent=39 // pred_fallthru
          _
        %s272 = sand.u32 %s18, 1
        %s273 = scalar_lea.sflag [#allocation5], %s272
        %s274 = sand.u32 %s85, 1
        %s275 = smul.addr %s274, 128
        %s276 = scalar_lea.vmem [#allocation8], %s275
        // Predicated region
        $region49: #{encoder_forward.1} parent=39 // pred_check
          %p277 = pneg %p98
        $region50: #{encoder_forward.1} parent=39 // pred_check_branch
          %279 = sbr.rel (%p277) target = $region52
        $region51: #{encoder_forward.1} parent=39 // pred_region
          %280 = dma.done %s273, 2048
        $region52: #{encoder_forward.1} parent=39 // pred_fallthru
          _
        %p281 = pneg %p51
        %p282 = pneg %p48
        %p283 = pneg %p72
        %p284 = pneg %p69
        %s285 = sand.u32 %s18, 1
        %s286 = scalar_lea.sflag [#allocation5], %s285
        %s287 = sand.u32 %s85, 1
        %s288 = smul.addr %s287, 128
        %s289 = scalar_lea.vmem [#allocation8], %s288
        %p290 = pneg %p98
        %p291 = pneg %p95
        %p292 = scmp.lt.s32.totalorder %s22, 2
        %s293 = scalar_select %p292, %s22, 2
        %s294 = scalar_lea.vmem %s3, %s293
        %p295 = pneg %p124
        %p296 = pneg %p121
        %p297 = scmp.lt.s32.totalorder %s22, 2
        %s298 = scalar_select %p297, %s22, 2
        %s299 = scalar_lea.vmem %s4, %s298
        %p300 = pneg %p150
        %p301 = pneg %p147
        %p302 = pneg %p176
        %p303 = pneg %p173
        %s304 = smul.u32 16, %s23
        %p305 = scmp.lt.s32.totalorder %s304, 15
        %s306 = scalar_select %p305, %s304, 15
        %s307 = smul.addr %s306, 8
        %s308 = scalar_lea.vmem %s5, %s307
        %s309 = smul.u32 16, %s23
        %p310 = scmp.lt.s32.totalorder %s22, 2
        %s311 = scalar_select %p310, %s22, 2
        %s312 = scalar_lea.vmem %s3, %s311
        %p313 = scmp.lt.s32.totalorder %s22, 2
        %s314 = scalar_select %p313, %s22, 2
        %s315 = scalar_lea.vmem %s4, %s314
        %s316 = smul.u32 16, %s23
        %p317 = scmp.lt.s32.totalorder %s316, 15
        %s318 = scalar_select %p317, %s316, 15
        %s319 = smul.addr %s318, 8
        %s320 = scalar_lea.vmem %s5, %s319
        %s321 = smul.u32 16, %s23
        %s323 = smul.u32 %s23, 128
        %s324 = sadd.s32 %s22, 1
        %s325 = sand.u32 %s324, 1
        %s326 = sand.u32 %s22, 1
        %p327 = scmp.eq.s32.totalorder %s22, 0
        %p328 = scmp.eq.s32.totalorder %s23, 0
        %p329 = pnand %p327, %p328
        %p330 = pneg %p329
        // Predicated region
        $region53: #{encoder_forward.1} parent=39 // pred_check
          _
        $region54: #{encoder_forward.1} parent=39 // pred_check_branch
          %332 = sbr.rel (%p329) target = $region56
        $region55: #{encoder_forward.1} parent=39 // pred_region
          %v333 = vld [vmem:[#allocation6] sm:$0xf]
          %v334 = vld [vmem:[#allocation6 + $0x4] sm:$0xf]
          %v335 = vld [vmem:[#allocation6 + $0x8] sm:$0xf]
          %v336 = vld [vmem:[#allocation6 + $0xc] sm:$0xf]
          %v337 = vld [vmem:[#allocation6 + $0x10] sm:$0xf]
          %v338 = vld [vmem:[#allocation6 + $0x14] sm:$0xf]
          %v339 = vld [vmem:[#allocation6 + $0x18] sm:$0xf]
          %v340 = vld [vmem:[#allocation6 + $0x1c] sm:$0xf]
          %v341 = vld [vmem:[#allocation6 + $0x20] sm:$0xf]
          %v342 = vld [vmem:[#allocation6 + $0x24] sm:$0xf]
          %v343 = vld [vmem:[#allocation6 + $0x28] sm:$0xf]
          %v344 = vld [vmem:[#allocation6 + $0x2c] sm:$0xf]
          %v345 = vld [vmem:[#allocation6 + $0x30] sm:$0xf]
          %v346 = vld [vmem:[#allocation6 + $0x34] sm:$0xf]
          %v347 = vld [vmem:[#allocation6 + $0x38] sm:$0xf]
          %v348 = vld [vmem:[#allocation6 + $0x3c] sm:$0xf]
          %v365 = vunpack.c.l.b16 %v333
          %v366 = vunpack.c.l.b16 %v334
          %v367 = vunpack.c.l.b16 %v335
          %v368 = vunpack.c.l.b16 %v336
          %v369 = vunpack.c.l.b16 %v337
          %v370 = vunpack.c.l.b16 %v338
          %v371 = vunpack.c.l.b16 %v339
          %v372 = vunpack.c.l.b16 %v340
          %v373 = vunpack.c.l.b16 %v341
          %v374 = vunpack.c.l.b16 %v342
          %v375 = vunpack.c.l.b16 %v343
          %v376 = vunpack.c.l.b16 %v344
          %v377 = vunpack.c.l.b16 %v345
          %v378 = vunpack.c.l.b16 %v346
          %v379 = vunpack.c.l.b16 %v347
          %v380 = vunpack.c.l.b16 %v348
          %v381 = vpack.c.b16 %v366, %v365
          %v382 = vpack.c.b16 %v368, %v367
          %v383 = vpack.c.b16 %v370, %v369
          %v384 = vpack.c.b16 %v372, %v371
          %v385 = vpack.c.b16 %v374, %v373
          %v386 = vpack.c.b16 %v376, %v375
          %v387 = vpack.c.b16 %v378, %v377
          %v388 = vpack.c.b16 %v380, %v379
          %s397 = scalar_lea.vmem [#allocation2], 64
          %398 = vst [vmem:[%s397] sm:$0xff] %v381
          %399 = vst [vmem:[%s397 + $0x8] sm:$0xff] %v382
          %400 = vst [vmem:[%s397 + $0x10] sm:$0xff] %v383
          %401 = vst [vmem:[%s397 + $0x18] sm:$0xff] %v384
          %402 = vst [vmem:[%s397 + $0x20] sm:$0xff] %v385
          %403 = vst [vmem:[%s397 + $0x28] sm:$0xff] %v386
          %404 = vst [vmem:[%s397 + $0x30] sm:$0xff] %v387
          %405 = vst [vmem:[%s397 + $0x38] sm:$0xff] %v388
        $region56: #{encoder_forward.1} parent=39 // pred_fallthru
          _
        %v406 = vld [vmem:[#allocation4] sm:$0xf]
        %v407 = vld [vmem:[#allocation4 + $0x4] sm:$0xf]
        %v408 = vld [vmem:[#allocation4 + $0x8] sm:$0xf]
        %v409 = vld [vmem:[#allocation4 + $0xc] sm:$0xf]
        %v410 = vld [vmem:[#allocation4 + $0x10] sm:$0xf]
        %v411 = vld [vmem:[#allocation4 + $0x14] sm:$0xf]
        %v412 = vld [vmem:[#allocation4 + $0x18] sm:$0xf]
        %v413 = vld [vmem:[#allocation4 + $0x1c] sm:$0xf]
        %v414 = vld [vmem:[#allocation4 + $0x20] sm:$0xf]
        %v415 = vld [vmem:[#allocation4 + $0x24] sm:$0xf]
        %v416 = vld [vmem:[#allocation4 + $0x28] sm:$0xf]
        %v417 = vld [vmem:[#allocation4 + $0x2c] sm:$0xf]
        %v418 = vld [vmem:[#allocation4 + $0x30] sm:$0xf]
        %v419 = vld [vmem:[#allocation4 + $0x34] sm:$0xf]
        %v420 = vld [vmem:[#allocation4 + $0x38] sm:$0xf]
        %v421 = vld [vmem:[#allocation4 + $0x3c] sm:$0xf]
        %s422 = smul.u32 %s325, 8
        %s423 = smul.addr %s422, 8
        %s424 = scalar_lea.vmem [#allocation2], %s423
        %v425 = vld [vmem:[%s424] sm:$0xff]
        %v426 = vld [vmem:[%s424 + $0x8] sm:$0xff]
        %v427 = vld [vmem:[%s424 + $0x10] sm:$0xff]
        %v428 = vld [vmem:[%s424 + $0x18] sm:$0xff]
        %v429 = vld [vmem:[%s424 + $0x20] sm:$0xff]
        %v430 = vld [vmem:[%s424 + $0x28] sm:$0xff]
        %v431 = vld [vmem:[%s424 + $0x30] sm:$0xff]
        %v432 = vld [vmem:[%s424 + $0x38] sm:$0xff]
        %v449 = vunpack.c.l.b16 %v406
        %v450 = vunpack.c.l.b16 %v407
        %v451 = vunpack.c.l.b16 %v408
        %v452 = vunpack.c.l.b16 %v409
        %v453 = vunpack.c.l.b16 %v410
        %v454 = vunpack.c.l.b16 %v411
        %v455 = vunpack.c.l.b16 %v412
        %v456 = vunpack.c.l.b16 %v413
        %v457 = vunpack.c.l.b16 %v414
        %v458 = vunpack.c.l.b16 %v415
        %v459 = vunpack.c.l.b16 %v416
        %v460 = vunpack.c.l.b16 %v417
        %v461 = vunpack.c.l.b16 %v418
        %v462 = vunpack.c.l.b16 %v419
        %v463 = vunpack.c.l.b16 %v420
        %v464 = vunpack.c.l.b16 %v421
        %v465 = vpack.c.b16 %v450, %v449
        %v466 = vpack.c.b16 %v452, %v451
        %v467 = vpack.c.b16 %v454, %v453
        %v468 = vpack.c.b16 %v456, %v455
        %v469 = vpack.c.b16 %v458, %v457
        %v470 = vpack.c.b16 %v460, %v459
        %v471 = vpack.c.b16 %v462, %v461
        %v472 = vpack.c.b16 %v464, %v463
        %481 = vmatprep.subr.bf16.mxu0 0
        %482 = vmatpush1.bf16.msra.mxu0 %v425
        %483 = vmatprep.subr.bf16.mxu0 0
        %484 = vmatpush1.bf16.msra.mxu0 %v426
        %485 = vmatprep.subr.bf16.mxu0 0
        %486 = vmatpush1.bf16.msra.mxu0 %v427
        %487 = vmatprep.subr.bf16.mxu0 0
        %488 = vmatpush1.bf16.msra.mxu0 %v428
        %489 = vmatprep.subr.bf16.mxu0 0
        %490 = vmatpush1.bf16.msra.mxu0 %v429
        %491 = vmatprep.subr.bf16.mxu0 0
        %492 = vmatpush1.bf16.msra.mxu0 %v430
        %493 = vmatprep.subr.bf16.mxu0 0
        %494 = vmatpush1.bf16.msra.mxu0 %v431
        %495 = vmatprep.subr.bf16.mxu0 0
        %496 = vmatpush1.bf16.msra.mxu0 %v432
        %497 = vmatprep.subr.bf16.mxu0 0
        %498 = vmatpush1.bf16.msra.mxu0 0
        %499 = vmatprep.subr.bf16.mxu0 0
        %500 = vmatpush1.bf16.msra.mxu0 0
        %501 = vmatprep.subr.bf16.mxu0 0
        %502 = vmatpush1.bf16.msra.mxu0 0
        %503 = vmatprep.subr.bf16.mxu0 0
        %504 = vmatpush1.bf16.msra.mxu0 0
        %505 = vmatprep.subr.bf16.mxu0 0
        %506 = vmatpush1.bf16.msra.mxu0 0
        %507 = vmatprep.subr.bf16.mxu0 0
        %508 = vmatpush1.bf16.msra.mxu0 0
        %509 = vmatprep.subr.bf16.mxu0 0
        %510 = vmatpush1.bf16.msra.mxu0 0
        %511 = vmatprep.subr.bf16.mxu0 0
        %512 = vmatpush1.bf16.msra.mxu0 0
        %513 = vmatprep.mubr.bf16.mxu0 0
        %514 = vmatmul.mubr.bf16.gmra.mrb[0].mxu0 %v465
        %v515 = vpop.f32.mrb[0].mxu0
        %v516 = vadd.f32 0.0, %v515
        %v517 = vpop.f32.mrb[0].mxu0
        %v518 = vpop.f32.mrb[0].mxu0
        %v519 = vadd.f32 0.0, %v518
        %v520 = vpop.f32.mrb[0].mxu0
        %521 = vmatprep.mubr.bf16.mxu0 0
        %522 = vmatmul.mubr.bf16.gmra.mrb[0].mxu0 %v466
        %v523 = vpop.f32.mrb[0].mxu0
        %v524 = vadd.f32 0.0, %v523
        %v525 = vpop.f32.mrb[0].mxu0
        %v526 = vpop.f32.mrb[0].mxu0
        %v527 = vadd.f32 0.0, %v526
        %v528 = vpop.f32.mrb[0].mxu0
        %529 = vmatprep.mubr.bf16.mxu0 0
        %530 = vmatmul.mubr.bf16.gmra.mrb[0].mxu0 %v467
        %v531 = vpop.f32.mrb[0].mxu0
        %v532 = vadd.f32 0.0, %v531
        %v533 = vpop.f32.mrb[0].mxu0
        %v534 = vpop.f32.mrb[0].mxu0
        %v535 = vadd.f32 0.0, %v534
        %v536 = vpop.f32.mrb[0].mxu0
        %537 = vmatprep.mubr.bf16.mxu0 0
        %538 = vmatmul.mubr.bf16.gmra.mrb[0].mxu0 %v468
        %v539 = vpop.f32.mrb[0].mxu0
        %v540 = vadd.f32 0.0, %v539
        %v541 = vpop.f32.mrb[0].mxu0
        %v542 = vpop.f32.mrb[0].mxu0
        %v543 = vadd.f32 0.0, %v542
        %v544 = vpop.f32.mrb[0].mxu0
        %545 = vmatprep.mubr.bf16.mxu0 0
        %546 = vmatmul.mubr.bf16.gmra.mrb[0].mxu0 %v469
        %v547 = vpop.f32.mrb[0].mxu0
        %v548 = vadd.f32 0.0, %v547
        %v549 = vpop.f32.mrb[0].mxu0
        %v550 = vpop.f32.mrb[0].mxu0
        %v551 = vadd.f32 0.0, %v550
        %v552 = vpop.f32.mrb[0].mxu0
        %553 = vmatprep.mubr.bf16.mxu0 0
        %554 = vmatmul.mubr.bf16.gmra.mrb[0].mxu0 %v470
        %v555 = vpop.f32.mrb[0].mxu0
        %v556 = vadd.f32 0.0, %v555
        %v557 = vpop.f32.mrb[0].mxu0
        %v558 = vpop.f32.mrb[0].mxu0
        %v559 = vadd.f32 0.0, %v558
        %v560 = vpop.f32.mrb[0].mxu0
        %561 = vmatprep.mubr.bf16.mxu0 0
        %562 = vmatmul.mubr.bf16.gmra.mrb[0].mxu0 %v471
        %v563 = vpop.f32.mrb[0].mxu0
        %v564 = vadd.f32 0.0, %v563
        %v565 = vpop.f32.mrb[0].mxu0
        %v566 = vpop.f32.mrb[0].mxu0
        %v567 = vadd.f32 0.0, %v566
        %v568 = vpop.f32.mrb[0].mxu0
        %569 = vmatprep.mubr.bf16.mxu0 0
        %570 = vmatmul.mubr.bf16.gmra.mrb[0].mxu0 %v472
        %v571 = vpop.f32.mrb[0].mxu0
        %v572 = vadd.f32 0.0, %v571
        %v573 = vpop.f32.mrb[0].mxu0
        %v574 = vpop.f32.mrb[0].mxu0
        %v575 = vadd.f32 0.0, %v574
        %v576 = vpop.f32.mrb[0].mxu0
        %577 = vdwg.mxu0
        %v578 = vpack.c.bf16 %v519, %v516
        %v579 = vpack.c.bf16 %v527, %v524
        %v580 = vpack.c.bf16 %v535, %v532
        %v581 = vpack.c.bf16 %v543, %v540
        %v582 = vpack.c.bf16 %v551, %v548
        %v583 = vpack.c.bf16 %v559, %v556
        %v584 = vpack.c.bf16 %v567, %v564
        %v585 = vpack.c.bf16 %v575, %v572
        %586 = vst [vmem:[#allocation3] sm:$0xff] %v578
        %587 = vst [vmem:[#allocation3 + $0x10] sm:$0xff] %v579
        %588 = vst [vmem:[#allocation3 + $0x20] sm:$0xff] %v580
        %589 = vst [vmem:[#allocation3 + $0x30] sm:$0xff] %v581
        %590 = vst [vmem:[#allocation3 + $0x40] sm:$0xff] %v582
        %591 = vst [vmem:[#allocation3 + $0x50] sm:$0xff] %v583
        %592 = vst [vmem:[#allocation3 + $0x60] sm:$0xff] %v584
        %593 = vst [vmem:[#allocation3 + $0x70] sm:$0xff] %v585
        %s594 = sshra.s32 %s323, 4
        %s595 = sand.u32 %s323, 15
        %s596 = smul.addr %s594, 8
        %s597 = scalar_lea.vmem %s424, %s596 [#allocation2]
        %v598 = vld [vmem:[%s597] sm:$0xff]
        %v599 = vld [vmem:[%s597 + $0x8] sm:$0xff]
        %v600 = vld [vmem:[%s597 + $0x10] sm:$0xff]
        %v601 = vld [vmem:[%s597 + $0x18] sm:$0xff]
        %v602 = vld [vmem:[%s597 + $0x20] sm:$0xff]
        %v603 = vld [vmem:[%s597 + $0x28] sm:$0xff]
        %v604 = vld [vmem:[%s597 + $0x30] sm:$0xff]
        %v605 = vld [vmem:[%s597 + $0x38] sm:$0xff]
        %606 = vst [vmem:[#allocation3 + $0x8] sm:$0xff] %v598
        %607 = vst [vmem:[#allocation3 + $0x18] sm:$0xff] %v599
        %608 = vst [vmem:[#allocation3 + $0x28] sm:$0xff] %v600
        %609 = vst [vmem:[#allocation3 + $0x38] sm:$0xff] %v601
        %610 = vst [vmem:[#allocation3 + $0x48] sm:$0xff] %v602
        %611 = vst [vmem:[#allocation3 + $0x58] sm:$0xff] %v603
        %612 = vst [vmem:[#allocation3 + $0x68] sm:$0xff] %v604
        %613 = vst [vmem:[#allocation3 + $0x78] sm:$0xff] %v605
        %v614 = vld [vmem:[#allocation3] sm:$0xff]
        %v615 = vld [vmem:[#allocation3 + $0x8] sm:$0xff]
        %v616 = vld [vmem:[#allocation3 + $0x10] sm:$0xff]
        %v617 = vld [vmem:[#allocation3 + $0x18] sm:$0xff]
        %v618 = vld [vmem:[#allocation3 + $0x20] sm:$0xff]
        %v619 = vld [vmem:[#allocation3 + $0x28] sm:$0xff]
        %v620 = vld [vmem:[#allocation3 + $0x30] sm:$0xff]
        %v621 = vld [vmem:[#allocation3 + $0x38] sm:$0xff]
        %v622 = vld [vmem:[#allocation3 + $0x40] sm:$0xff]
        %v623 = vld [vmem:[#allocation3 + $0x48] sm:$0xff]
        %v624 = vld [vmem:[#allocation3 + $0x50] sm:$0xff]
        %v625 = vld [vmem:[#allocation3 + $0x58] sm:$0xff]
        %v626 = vld [vmem:[#allocation3 + $0x60] sm:$0xff]
        %v627 = vld [vmem:[#allocation3 + $0x68] sm:$0xff]
        %v628 = vld [vmem:[#allocation3 + $0x70] sm:$0xff]
        %v629 = vld [vmem:[#allocation3 + $0x78] sm:$0xff]
        %v630 = vld [vmem:[%s276] sm:$0xf]
        %v631 = vld [vmem:[%s276 + $0x4] sm:$0xf]
        %v632 = vld [vmem:[%s276 + $0x8] sm:$0xf]
        %v633 = vld [vmem:[%s276 + $0xc] sm:$0xf]
        %v634 = vld [vmem:[%s276 + $0x10] sm:$0xf]
        %v635 = vld [vmem:[%s276 + $0x14] sm:$0xf]
        %v636 = vld [vmem:[%s276 + $0x18] sm:$0xf]
        %v637 = vld [vmem:[%s276 + $0x1c] sm:$0xf]
        %v638 = vld [vmem:[%s276 + $0x20] sm:$0xf]
        %v639 = vld [vmem:[%s276 + $0x24] sm:$0xf]
        %v640 = vld [vmem:[%s276 + $0x28] sm:$0xf]
        %v641 = vld [vmem:[%s276 + $0x2c] sm:$0xf]
        %v642 = vld [vmem:[%s276 + $0x30] sm:$0xf]
        %v643 = vld [vmem:[%s276 + $0x34] sm:$0xf]
        %v644 = vld [vmem:[%s276 + $0x38] sm:$0xf]
        %v645 = vld [vmem:[%s276 + $0x3c] sm:$0xf]
        %v646 = vld [vmem:[%s276 + $0x40] sm:$0xf]
        %v647 = vld [vmem:[%s276 + $0x44] sm:$0xf]
        %v648 = vld [vmem:[%s276 + $0x48] sm:$0xf]
        %v649 = vld [vmem:[%s276 + $0x4c] sm:$0xf]
        %v650 = vld [vmem:[%s276 + $0x50] sm:$0xf]
        %v651 = vld [vmem:[%s276 + $0x54] sm:$0xf]
        %v652 = vld [vmem:[%s276 + $0x58] sm:$0xf]
        %v653 = vld [vmem:[%s276 + $0x5c] sm:$0xf]
        %v654 = vld [vmem:[%s276 + $0x60] sm:$0xf]
        %v655 = vld [vmem:[%s276 + $0x64] sm:$0xf]
        %v656 = vld [vmem:[%s276 + $0x68] sm:$0xf]
        %v657 = vld [vmem:[%s276 + $0x6c] sm:$0xf]
        %v658 = vld [vmem:[%s276 + $0x70] sm:$0xf]
        %v659 = vld [vmem:[%s276 + $0x74] sm:$0xf]
        %v660 = vld [vmem:[%s276 + $0x78] sm:$0xf]
        %v661 = vld [vmem:[%s276 + $0x7c] sm:$0xf]
        %v662 = vld [vmem:[%s312] sm:$0x1]
        %v664 = vlaneseq
        %v665 = vshrl.u32 %v664, 7
        %v666 = vsub.s32 0, %v665
        %v667 = vrot.slane %v662, %v666
        %v701 = vunpack.c.l.b16 %v630
        %v702 = vunpack.c.l.b16 %v631
        %v703 = vunpack.c.l.b16 %v632
        %v704 = vunpack.c.l.b16 %v633
        %v705 = vunpack.c.l.b16 %v634
        %v706 = vunpack.c.l.b16 %v635
        %v707 = vunpack.c.l.b16 %v636
        %v708 = vunpack.c.l.b16 %v637
        %v709 = vunpack.c.l.b16 %v638
        %v710 = vunpack.c.l.b16 %v639
        %v711 = vunpack.c.l.b16 %v640
        %v712 = vunpack.c.l.b16 %v641
        %v713 = vunpack.c.l.b16 %v642
        %v714 = vunpack.c.l.b16 %v643
        %v715 = vunpack.c.l.b16 %v644
        %v716 = vunpack.c.l.b16 %v645
        %v717 = vunpack.c.l.b16 %v646
        %v718 = vunpack.c.l.b16 %v647
        %v719 = vunpack.c.l.b16 %v648
        %v720 = vunpack.c.l.b16 %v649
        %v721 = vunpack.c.l.b16 %v650
        %v722 = vunpack.c.l.b16 %v651
        %v723 = vunpack.c.l.b16 %v652
        %v724 = vunpack.c.l.b16 %v653
        %v725 = vunpack.c.l.b16 %v654
        %v726 = vunpack.c.l.b16 %v655
        %v727 = vunpack.c.l.b16 %v656
        %v728 = vunpack.c.l.b16 %v657
        %v729 = vunpack.c.l.b16 %v658
        %v730 = vunpack.c.l.b16 %v659
        %v731 = vunpack.c.l.b16 %v660
        %v732 = vunpack.c.l.b16 %v661
        %v733 = vpack.c.b16 %v702, %v701
        %v734 = vpack.c.b16 %v704, %v703
        %v735 = vpack.c.b16 %v706, %v705
        %v736 = vpack.c.b16 %v708, %v707
        %v737 = vpack.c.b16 %v710, %v709
        %v738 = vpack.c.b16 %v712, %v711
        %v739 = vpack.c.b16 %v714, %v713
        %v740 = vpack.c.b16 %v716, %v715
        %v741 = vpack.c.b16 %v718, %v717
        %v742 = vpack.c.b16 %v720, %v719
        %v743 = vpack.c.b16 %v722, %v721
        %v744 = vpack.c.b16 %v724, %v723
        %v745 = vpack.c.b16 %v726, %v725
        %v746 = vpack.c.b16 %v728, %v727
        %v747 = vpack.c.b16 %v730, %v729
        %v748 = vpack.c.b16 %v732, %v731
        %765 = vmatprep.subr.bf16.mxu0 0
        %766 = vmatpush1.bf16.msra.mxu0 %v733
        %767 = vmatprep.subr.bf16.mxu0 0
        %768 = vmatpush1.bf16.msra.mxu0 %v734
        %769 = vmatprep.subr.bf16.mxu0 0
        %770 = vmatpush1.bf16.msra.mxu0 %v735
        %771 = vmatprep.subr.bf16.mxu0 0
        %772 = vmatpush1.bf16.msra.mxu0 %v736
        %773 = vmatprep.subr.bf16.mxu0 0
        %774 = vmatpush1.bf16.msra.mxu0 %v737
        %775 = vmatprep.subr.bf16.mxu0 0
        %776 = vmatpush1.bf16.msra.mxu0 %v738
        %777 = vmatprep.subr.bf16.mxu0 0
        %778 = vmatpush1.bf16.msra.mxu0 %v739
        %779 = vmatprep.subr.bf16.mxu0 0
        %780 = vmatpush1.bf16.msra.mxu0 %v740
        %781 = vmatprep.subr.bf16.mxu0 0
        %782 = vmatpush1.bf16.msra.mxu0 %v741
        %783 = vmatprep.subr.bf16.mxu0 0
        %784 = vmatpush1.bf16.msra.mxu0 %v742
        %785 = vmatprep.subr.bf16.mxu0 0
        %786 = vmatpush1.bf16.msra.mxu0 %v743
        %787 = vmatprep.subr.bf16.mxu0 0
        %788 = vmatpush1.bf16.msra.mxu0 %v744
        %789 = vmatprep.subr.bf16.mxu0 0
        %790 = vmatpush1.bf16.msra.mxu0 %v745
        %791 = vmatprep.subr.bf16.mxu0 0
        %792 = vmatpush1.bf16.msra.mxu0 %v746
        %793 = vmatprep.subr.bf16.mxu0 0
        %794 = vmatpush1.bf16.msra.mxu0 %v747
        %795 = vmatprep.subr.bf16.mxu0 0
        %796 = vmatpush1.bf16.msra.mxu0 %v748
        %797 = vmatprep.mubr.bf16.mxu0 %v615
        %798 = vmatmul.mubr.bf16.gmra.mrb[0].mxu0 %v614
        %v799 = vpop.f32.mrb[0].mxu0
        %v800 = vadd.f32 %v667, %v799
        %v801 = vpop.f32.mrb[0].mxu0
        %v802 = vpop.f32.mrb[0].mxu0
        %v803 = vadd.f32 %v667, %v802
        %v804 = vpop.f32.mrb[0].mxu0
        %805 = vmatprep.mubr.bf16.mxu0 %v617
        %806 = vmatmul.mubr.bf16.gmra.mrb[0].mxu0 %v616
        %v807 = vpop.f32.mrb[0].mxu0
        %v808 = vadd.f32 %v667, %v807
        %v809 = vpop.f32.mrb[0].mxu0
        %v810 = vpop.f32.mrb[0].mxu0
        %v811 = vadd.f32 %v667, %v810
        %v812 = vpop.f32.mrb[0].mxu0
        %813 = vmatprep.mubr.bf16.mxu0 %v619
        %814 = vmatmul.mubr.bf16.gmra.mrb[0].mxu0 %v618
        %v815 = vpop.f32.mrb[0].mxu0
        %v816 = vadd.f32 %v667, %v815
        %v817 = vpop.f32.mrb[0].mxu0
        %v818 = vpop.f32.mrb[0].mxu0
        %v819 = vadd.f32 %v667, %v818
        %v820 = vpop.f32.mrb[0].mxu0
        %821 = vmatprep.mubr.bf16.mxu0 %v621
        %822 = vmatmul.mubr.bf16.gmra.mrb[0].mxu0 %v620
        %v823 = vpop.f32.mrb[0].mxu0
        %v824 = vadd.f32 %v667, %v823
        %v825 = vpop.f32.mrb[0].mxu0
        %v826 = vpop.f32.mrb[0].mxu0
        %v827 = vadd.f32 %v667, %v826
        %v828 = vpop.f32.mrb[0].mxu0
        %829 = vmatprep.mubr.bf16.mxu0 %v623
        %830 = vmatmul.mubr.bf16.gmra.mrb[0].mxu0 %v622
        %v831 = vpop.f32.mrb[0].mxu0
        %v832 = vadd.f32 %v667, %v831
        %v833 = vpop.f32.mrb[0].mxu0
        %v834 = vpop.f32.mrb[0].mxu0
        %v835 = vadd.f32 %v667, %v834
        %v836 = vpop.f32.mrb[0].mxu0
        %837 = vmatprep.mubr.bf16.mxu0 %v625
        %838 = vmatmul.mubr.bf16.gmra.mrb[0].mxu0 %v624
        %v839 = vpop.f32.mrb[0].mxu0
        %v840 = vadd.f32 %v667, %v839
        %v841 = vpop.f32.mrb[0].mxu0
        %v842 = vpop.f32.mrb[0].mxu0
        %v843 = vadd.f32 %v667, %v842
        %v844 = vpop.f32.mrb[0].mxu0
        %845 = vmatprep.mubr.bf16.mxu0 %v627
        %846 = vmatmul.mubr.bf16.gmra.mrb[0].mxu0 %v626
        %v847 = vpop.f32.mrb[0].mxu0
        %v848 = vadd.f32 %v667, %v847
        %v849 = vpop.f32.mrb[0].mxu0
        %v850 = vpop.f32.mrb[0].mxu0
        %v851 = vadd.f32 %v667, %v850
        %v852 = vpop.f32.mrb[0].mxu0
        %853 = vmatprep.mubr.bf16.mxu0 %v629
        %854 = vmatmul.mubr.bf16.gmra.mrb[0].mxu0 %v628
        %v855 = vpop.f32.mrb[0].mxu0
        %v856 = vadd.f32 %v667, %v855
        %v857 = vpop.f32.mrb[0].mxu0
        %v858 = vpop.f32.mrb[0].mxu0
        %v859 = vadd.f32 %v667, %v858
        %v860 = vpop.f32.mrb[0].mxu0
        %861 = vdwg.mxu0
        %vm862 = vcmp.gt.f32.partialorder %v800, 0.0
        %vm863 = vcmp.gt.f32.partialorder %v803, 0.0
        %vm864 = vcmp.gt.f32.partialorder %v808, 0.0
        %vm865 = vcmp.gt.f32.partialorder %v811, 0.0
        %vm866 = vcmp.gt.f32.partialorder %v816, 0.0
        %vm867 = vcmp.gt.f32.partialorder %v819, 0.0
        %vm868 = vcmp.gt.f32.partialorder %v824, 0.0
        %vm869 = vcmp.gt.f32.partialorder %v827, 0.0
        %vm870 = vcmp.gt.f32.partialorder %v832, 0.0
        %vm871 = vcmp.gt.f32.partialorder %v835, 0.0
        %vm872 = vcmp.gt.f32.partialorder %v840, 0.0
        %vm873 = vcmp.gt.f32.partialorder %v843, 0.0
        %vm874 = vcmp.gt.f32.partialorder %v848, 0.0
        %vm875 = vcmp.gt.f32.partialorder %v851, 0.0
        %vm876 = vcmp.gt.f32.partialorder %v856, 0.0
        %vm877 = vcmp.gt.f32.partialorder %v859, 0.0
        %v878 = vld [vmem:[%s315] sm:$0x1]
        %v880 = vlaneseq
        %v881 = vshrl.u32 %v880, 7
        %v882 = vsub.s32 0, %v881
        %v883 = vrot.slane %v878, %v882
        %v885 = vmul.f32 %v883, %v800
        %v886 = vmul.f32 %v883, %v803
        %v887 = vmul.f32 %v883, %v808
        %v888 = vmul.f32 %v883, %v811
        %v889 = vmul.f32 %v883, %v816
        %v890 = vmul.f32 %v883, %v819
        %v891 = vmul.f32 %v883, %v824
        %v892 = vmul.f32 %v883, %v827
        %v893 = vmul.f32 %v883, %v832
        %v894 = vmul.f32 %v883, %v835
        %v895 = vmul.f32 %v883, %v840
        %v896 = vmul.f32 %v883, %v843
        %v897 = vmul.f32 %v883, %v848
        %v898 = vmul.f32 %v883, %v851
        %v899 = vmul.f32 %v883, %v856
        %v900 = vmul.f32 %v883, %v859
        %v901 = vsel %vm862, %v800, %v885
        %v902 = vsel %vm863, %v803, %v886
        %v903 = vsel %vm864, %v808, %v887
        %v904 = vsel %vm865, %v811, %v888
        %v905 = vsel %vm866, %v816, %v889
        %v906 = vsel %vm867, %v819, %v890
        %v907 = vsel %vm868, %v824, %v891
        %v908 = vsel %vm869, %v827, %v892
        %v909 = vsel %vm870, %v832, %v893
        %v910 = vsel %vm871, %v835, %v894
        %v911 = vsel %vm872, %v840, %v895
        %v912 = vsel %vm873, %v843, %v896
        %v913 = vsel %vm874, %v848, %v897
        %v914 = vsel %vm875, %v851, %v898
        %v915 = vsel %vm876, %v856, %v899
        %v916 = vsel %vm877, %v859, %v900
        %917 = vst [vmem:[%s320] sm:$0xff] %v901
        %918 = vst [vmem:[%s320 + $0x8] sm:$0xff] %v902
        %919 = vst [vmem:[%s320 + $0x10] sm:$0xff] %v903
        %920 = vst [vmem:[%s320 + $0x18] sm:$0xff] %v904
        %921 = vst [vmem:[%s320 + $0x20] sm:$0xff] %v905
        %922 = vst [vmem:[%s320 + $0x28] sm:$0xff] %v906
        %923 = vst [vmem:[%s320 + $0x30] sm:$0xff] %v907
        %924 = vst [vmem:[%s320 + $0x38] sm:$0xff] %v908
        %925 = vst [vmem:[%s320 + $0x40] sm:$0xff] %v909
        %926 = vst [vmem:[%s320 + $0x48] sm:$0xff] %v910
        %927 = vst [vmem:[%s320 + $0x50] sm:$0xff] %v911
        %928 = vst [vmem:[%s320 + $0x58] sm:$0xff] %v912
        %929 = vst [vmem:[%s320 + $0x60] sm:$0xff] %v913
        %930 = vst [vmem:[%s320 + $0x68] sm:$0xff] %v914
        %931 = vst [vmem:[%s320 + $0x70] sm:$0xff] %v915
        %932 = vst [vmem:[%s320 + $0x78] sm:$0xff] %v916
        %p933 = scmp.lt.s32.totalorder %s22, 2
        // Predicated region
        $region57: #{encoder_forward.1} parent=39 // pred_check
          %p934 = pneg %p933
        $region58: #{encoder_forward.1} parent=39 // pred_check_branch
          %936 = sbr.rel (%p934) target = $region60
        $region59: #{encoder_forward.1} parent=39 // pred_region
          %v937 = vpack.c.bf16 %v902, %v901
          %v938 = vpack.c.bf16 %v904, %v903
          %v939 = vpack.c.bf16 %v906, %v905
          %v940 = vpack.c.bf16 %v908, %v907
          %v941 = vpack.c.bf16 %v910, %v909
          %v942 = vpack.c.bf16 %v912, %v911
          %v943 = vpack.c.bf16 %v914, %v913
          %v944 = vpack.c.bf16 %v916, %v915
          %s945 = smul.u32 %s326, 8
          %s946 = sadd.s32 %s594, %s945
          %s947 = smul.addr %s946, 8
          %s948 = scalar_lea.vmem [#allocation2], %s947
          %949 = vst [vmem:[%s948] sm:$0xff] %v937
          %950 = vst [vmem:[%s948 + $0x8] sm:$0xff] %v938
          %951 = vst [vmem:[%s948 + $0x10] sm:$0xff] %v939
          %952 = vst [vmem:[%s948 + $0x18] sm:$0xff] %v940
          %953 = vst [vmem:[%s948 + $0x20] sm:$0xff] %v941
          %954 = vst [vmem:[%s948 + $0x28] sm:$0xff] %v942
          %955 = vst [vmem:[%s948 + $0x30] sm:$0xff] %v943
          %956 = vst [vmem:[%s948 + $0x38] sm:$0xff] %v944
        $region60: #{encoder_forward.1} parent=39 // pred_fallthru
          _
        %s957 = smul.u32 16, %s23
        %p958 = scmp.lt.s32.totalorder %s957, 15
        %s959 = scalar_select %p958, %s957, 15
        %s960 = smul.addr %s959, 8
        %s961 = scalar_lea.vmem %s5, %s960
        // Predicated region
        $region61: #{encoder_forward.1} parent=39 // pred_check
          %p962 = pneg %p173
        $region62: #{encoder_forward.1} parent=39 // pred_check_branch
          %964 = sbr.rel (%p962) target = $region64
        $region63: #{encoder_forward.1} parent=39 // pred_region
          %s965 = smul.u32 16, %s23
        $region64: #{encoder_forward.1} parent=39 // pred_fallthru
          _
        // Predicated region
        $region65: #{encoder_forward.1} parent=39 // pred_check
          %p966 = pneg %p173
        $region66: #{encoder_forward.1} parent=39 // pred_check_branch
          %968 = sbr.rel (%p966) target = $region68
        $region67: #{encoder_forward.1} parent=39 // pred_region
          %s969 = smul.u32 16, %s23
          %p970 = scmp.lt.s32.totalorder %s969, 15
          %s971 = scalar_select %p970, %s969, 15
          %s972 = smul.addr %s971, 8
          %s973 = scalar_lea.vmem %s5, %s972
        $region68: #{encoder_forward.1} parent=39 // pred_fallthru
          _
      $region40: #{encoder_forward.1} parent=5 // pred_fallthru
        _
      %p974 = scmp.le.s32.totalorder 2, %s13
      // Predicated region
      $region69: #{encoder_forward.1} parent=5 // pred_check
        %p975 = pneg %p974
      $region70: #{encoder_forward.1} parent=5 // pred_check_branch
        %977 = sbr.rel (%p975) target = $region72
      $region71: #{encoder_forward.1} parent=5 // pred_region
        %s978 = ssub.s32 %s13, 2
      $region72: #{encoder_forward.1} parent=5 // pred_fallthru
        _
    $region6: #{encoder_forward.1} parent=1 // loop_footer
      %s17 = sadd.s32 1, %s13
    $region7: #{encoder_forward.1} parent=1 // loop_footer_branch
      %12 = sbr.rel target = $region3
    $region8: #{encoder_forward.1} parent=1 // loop_exit
      _
    %979 = vsyncpa [#allocation5], 1
    %s980 = scalar_lea.sflag [#allocation5], 1
    %981 = vsyncpa %s980, 1
    %982 = vsyncpa [#allocation7], 1

</llo_original>
